<compile_context>
chip_gen: v5e
topology: v5e:2x2
jax: 0.10.0
libtpu: 0.0.40
codegen_flags: <defaults>
</compile_context>

<pallas_src>
import math
import jax
import jax.numpy as jnp
from jax import lax
from jax.experimental import pallas as pl
from jax.experimental.pallas import tpu as pltpu

# ---- small, module-consistent shapes ----
B = 2                 # batch
S = 8                 # sequence length
D_MODEL = 128         # d_model
NUM_HEADS = 4
HEAD_DIM = D_MODEL // NUM_HEADS
FFN_HIDDEN = 256
EPS = 1e-5

BS = B * S            # total tokens
HS = NUM_HEADS * S    # stacked score rows per batch (head-major)


def _layernorm(x, gamma, beta):
    # x: (S, D), gamma/beta: (1, D)
    mean = jnp.mean(x, axis=-1, keepdims=True)
    var = jnp.mean(jnp.square(x - mean), axis=-1, keepdims=True)
    return gamma * ((x - mean) * lax.rsqrt(var + EPS)) + beta


def encoder_layer_kernel(x_ref, hm_ref, am_ref,
                         wqkv_ref, wo_ref, w1_ref, w2_ref, vecs_ref,
                         o_ref):
    x = x_ref[...]                       # (S, D) f32  — one batch's token slab
    head_mask = hm_ref[...]              # (HS, D) f32 — 1 where feature belongs to row's head
    attn_mask = am_ref[...]              # (HS, S) f32 — user additive mask, tiled per head
    vecs = vecs_ref[...]                 # (8, 3D) f32 — packed bias / LayerNorm vectors

    bqkv = vecs[0:1, :]                  # (1, 3D)
    bo   = vecs[1:2, :D_MODEL]
    g1   = vecs[2:3, :D_MODEL]
    be1  = vecs[3:4, :D_MODEL]
    bf1  = vecs[4:5, :FFN_HIDDEN]
    bf2  = vecs[5:6, :D_MODEL]
    g2   = vecs[6:7, :D_MODEL]
    be2  = vecs[7:8, :D_MODEL]

    # ------------- multi-head self-attention (all heads fused) -------------
    # bf16 LHS x bf16 weights -> f32 accumulation: single-pass MXU matmul.
    qkv = jnp.dot(x.astype(jnp.bfloat16), wqkv_ref[...],
                  preferred_element_type=jnp.float32) + bqkv          # (S, 3D)
    q = qkv[:, :D_MODEL]                 # 128-lane aligned slices
    k = qkv[:, D_MODEL:2 * D_MODEL]
    v = qkv[:, 2 * D_MODEL:]

    # Replicate Q head-major (sublane copies), zero the non-head features, then a
    # single full-width matmul produces every head's score block at once.
    q_stack = jnp.concatenate([q] * NUM_HEADS, axis=0) * head_mask    # (HS, D)
    scores = lax.dot_general(q_stack, k, (((1,), (1,)), ((), ())),
                             preferred_element_type=jnp.float32)       # (HS, S)
    scores = scores * (1.0 / math.sqrt(HEAD_DIM)) + attn_mask

    m = jnp.max(scores, axis=-1, keepdims=True)
    p = jnp.exp(scores - m)
    denom = jnp.sum(p, axis=-1, keepdims=True)
    p = p * pl.reciprocal(denom, approx=False)     # exact reciprocal

    # One matmul for every head's P@V block, mask to the head's feature block and
    # collapse heads with sublane-aligned adds (no sub-128-lane slices).
    w_all = jnp.dot(p, v, preferred_element_type=jnp.float32) * head_mask  # (HS, D)
    vals = w_all.reshape(NUM_HEADS, S, D_MODEL).sum(axis=0)                # (S, D)

    attn = jnp.dot(vals.astype(jnp.bfloat16), wo_ref[...],
                   preferred_element_type=jnp.float32) + bo

    # dropout1: identity in eval mode
    # TODO(synk): training-mode dropout (p=0.1) not implemented (inference semantics)
    h1 = _layernorm(attn + x, g1, be1)                                     # (S, D)

    # ------------- position-wise feed-forward -------------
    ff = jnp.dot(h1.astype(jnp.bfloat16), w1_ref[...],
                 preferred_element_type=jnp.float32) + bf1
    ff = jnp.maximum(ff, 0.0)
    ff = jnp.dot(ff.astype(jnp.bfloat16), w2_ref[...],
                 preferred_element_type=jnp.float32) + bf2

    # dropout2: identity in eval mode
    o_ref[...] = _layernorm(ff + h1, g2, be2).astype(o_ref.dtype)


def _qkv_col_perm():
    # torch layout: per head h the qkv_layer columns are [q_h | k_h | v_h];
    # kernel wants contiguous [Q_all | K_all | V_all] (heads in order inside each).
    cols = []
    for part in range(3):                      # 0=q, 1=k, 2=v
        for h in range(NUM_HEADS):
            start = h * 3 * HEAD_DIM + part * HEAD_DIM
            cols.append(jnp.arange(start, start + HEAD_DIM))
    return jnp.concatenate(cols)


def _pack_small_operands(mask, bqkv_p, bo, g1, be1, bf1, bf2, g2, be2):
    # head_mask[r, d] = 1 iff feature d belongs to the head of stacked row r (r = h*S + i).
    r = jnp.arange(HS)
    d = jnp.arange(D_MODEL)
    head_mask = (d[None, :] // HEAD_DIM == r[:, None] // S).astype(jnp.float32)   # (HS, D)

    # user additive (S, S) mask tiled head-major -> (HS, S)
    attn_mask = jnp.tile(mask.astype(jnp.float32), (NUM_HEADS, 1))

    # eight (1, N) vectors packed row-wise into one (8, 3D) operand -> single DMA.
    vecs = jnp.zeros((8, 3 * D_MODEL), jnp.float32)
    vecs = vecs.at[0, :].set(bqkv_p[0])
    vecs = vecs.at[1, :D_MODEL].set(bo[0])
    vecs = vecs.at[2, :D_MODEL].set(g1[0])
    vecs = vecs.at[3, :D_MODEL].set(be1[0])
    vecs = vecs.at[4, :FFN_HIDDEN].set(bf1[0])
    vecs = vecs.at[5, :D_MODEL].set(bf2[0])
    vecs = vecs.at[6, :D_MODEL].set(g2[0])
    vecs = vecs.at[7, :D_MODEL].set(be2[0])
    return head_mask, attn_mask, vecs


def encoder_layer(x, mask, params):
    (wqkv, bqkv, wo, bo, g1, be1, w1, bf1, w2, bf2, g2, be2) = params

    perm = _qkv_col_perm()
    wqkv_p = wqkv[:, perm]                               # stays bf16, cols = [Q|K|V]
    bqkv_p = bqkv[:, perm].astype(jnp.float32)
    head_mask, attn_mask, vecs = _pack_small_operands(
        mask, bqkv_p, bo, g1, be1, bf1, bf2, g2, be2)
    x2 = x.reshape(BS, D_MODEL)

    def resident(shape):                                 # same block every grid step
        return pl.BlockSpec(shape, lambda b: (0,) * len(shape))

    out = pl.pallas_call(
        encoder_layer_kernel,
        out_shape=jax.ShapeDtypeStruct((BS, D_MODEL), jnp.float32),
        grid=(B,),                                       # one parallel step per batch
        in_specs=[
            pl.BlockSpec((S, D_MODEL), lambda b: (b, 0)),    # per-batch token slab
            resident((HS, D_MODEL)),                         # head feature mask (f32)
            resident((HS, S)),                               # additive attention mask (f32)
            resident((D_MODEL, 3 * D_MODEL)),                # Wqkv (bf16)
            resident((D_MODEL, D_MODEL)),                    # Wo   (bf16)
            resident((D_MODEL, FFN_HIDDEN)),                 # W1   (bf16)
            resident((FFN_HIDDEN, D_MODEL)),                 # W2   (bf16)
            resident((8, 3 * D_MODEL)),                      # packed bias / LN vectors
        ],
        out_specs=pl.BlockSpec((S, D_MODEL), lambda b: (b, 0)),
        compiler_params=pltpu.CompilerParams(dimension_semantics=("parallel",)),
    )(x2, head_mask, attn_mask, wqkv_p, wo, w1, w2, vecs)
    return out.reshape(B, S, D_MODEL)


# ---------------- pure-JAX reference (bf16-matmul-aligned, for correctness check) ----------------
def encoder_layer_ref(x, mask, params):
    (wqkv, bqkv, wo, bo, g1, be1, w1, bf1, w2, bf2, g2, be2) = params
    hi = jax.lax.Precision.HIGHEST

    def ln(t, g, b):
        mean = jnp.mean(t, axis=-1, keepdims=True)
        var = jnp.mean((t - mean) ** 2, axis=-1, keepdims=True)
        return g[0] * ((t - mean) / jnp.sqrt(var + EPS)) + b[0]

    def mm(a, w):
        # bf16 LHS x bf16 weights, f32 accumulation — same rounding points as the kernel.
        a2 = a.astype(jnp.bfloat16).reshape(-1, a.shape[-1])
        return jnp.dot(a2, w, preferred_element_type=jnp.float32).reshape(
            *a.shape[:-1], w.shape[-1])

    qkv = mm(x, wqkv) + bqkv[0]                                   # (B, S, 3D)
    qkv = qkv.reshape(B, S, NUM_HEADS, 3 * HEAD_DIM).transpose(0, 2, 1, 3)
    q, k, v = jnp.split(qkv, 3, axis=-1)                          # (B, H, S, hd)
    s = jnp.einsum('bhqd,bhkd->bhqk', q, k, precision=hi) / math.sqrt(HEAD_DIM) + mask
    p = jax.nn.softmax(s, axis=-1)
    vals = jnp.einsum('bhqk,bhkd->bhqd', p, v, precision=hi)
    vals = vals.transpose(0, 2, 1, 3).reshape(B, S, D_MODEL)
    attn = mm(vals, wo) + bo[0]
    h1 = ln(attn + x, g1, be1)
    ff = jnp.maximum(mm(h1, w1) + bf1[0], 0.0)
    ff = mm(ff, w2) + bf2[0]
    return ln(ff + h1, g2, be2)


if __name__ == "__main__":
    key = jax.random.PRNGKey(0)
    ks = jax.random.split(key, 10)

    x = jax.random.normal(ks[0], (B, S, D_MODEL), dtype=jnp.float32)
    # deterministic additive mask: causal-style (0 / -1e9), shape (S, S)
    mask = jnp.where(jnp.arange(S)[None, :] > jnp.arange(S)[:, None],
                     -1e9, 0.0).astype(jnp.float32)

    def bf16_w(k, shape):
        return (0.05 * jax.random.normal(k, shape, dtype=jnp.float32)).astype(jnp.bfloat16)

    params = (
        bf16_w(ks[1], (D_MODEL, 3 * D_MODEL)),                                        # Wqkv
        0.05 * jax.random.normal(ks[2], (1, 3 * D_MODEL), dtype=jnp.float32),         # bqkv
        bf16_w(ks[3], (D_MODEL, D_MODEL)),                                            # Wo
        0.05 * jax.random.normal(ks[4], (1, D_MODEL), dtype=jnp.float32),             # bo
        jnp.ones((1, D_MODEL), dtype=jnp.float32),                                    # gamma1
        jnp.zeros((1, D_MODEL), dtype=jnp.float32),                                   # beta1
        bf16_w(ks[5], (D_MODEL, FFN_HIDDEN)),                                         # W1
        0.05 * jax.random.normal(ks[6], (1, FFN_HIDDEN), dtype=jnp.float32),          # b1
        bf16_w(ks[7], (FFN_HIDDEN, D_MODEL)),                                         # W2
        0.05 * jax.random.normal(ks[8], (1, D_MODEL), dtype=jnp.float32),             # b2
        jnp.ones((1, D_MODEL), dtype=jnp.float32),                                    # gamma2
        jnp.zeros((1, D_MODEL), dtype=jnp.float32),                                   # beta2
    )

    out = jax.block_until_ready(encoder_layer(x, mask, params))
    ref = encoder_layer_ref(x, mask, params)

    assert out.shape == (B, S, D_MODEL)
    # Kernel and reference share the same bf16 matmul-input rounding; remaining
    # differences are f32 accumulation order and rare 1-ulp bf16 cast flips, so a
    # 1e-3 tolerance is appropriate for the mixed-precision (bf16 MXU / f32 acc) path.
    err = float(jnp.max(jnp.abs(out - ref)))
    assert jnp.allclose(out, ref, atol=1e-3, rtol=1e-3), err

    print("KERNEL_OK")
</pallas_src>

<mosaic_0001>
module attributes {stable_mosaic.version = 11 : i64} {
  func.func @encoder_layer_kernel(%arg0: i32, %arg1: memref<8x128xf32, #tpu.memory_space<vmem>>, %arg2: memref<32x128xf32, #tpu.memory_space<vmem>>, %arg3: memref<32x8xf32, #tpu.memory_space<vmem>>, %arg4: memref<128x384xbf16, #tpu.memory_space<vmem>>, %arg5: memref<128x128xbf16, #tpu.memory_space<vmem>>, %arg6: memref<128x256xbf16, #tpu.memory_space<vmem>>, %arg7: memref<256x128xbf16, #tpu.memory_space<vmem>>, %arg8: memref<8x384xf32, #tpu.memory_space<vmem>>, %arg9: memref<8x128xf32, #tpu.memory_space<vmem>>) attributes {dimension_semantics = [#tpu.dimension_semantics<parallel>], iteration_bounds = array<i64: 2>, scalar_prefetch = 0 : i64, scratch_operands = 0 : i64, tpu.core_type = #tpu.core_type<tc>, window_params = [{transform_indices = @transform_0, window_bounds = array<i64: 8, 128>}, {pipeline_mode = #tpu.pipeline_mode<synchronous>, transform_indices = @transform_1, window_bounds = array<i64: 32, 128>}, {pipeline_mode = #tpu.pipeline_mode<synchronous>, transform_indices = @transform_2, window_bounds = array<i64: 32, 8>}, {pipeline_mode = #tpu.pipeline_mode<synchronous>, transform_indices = @transform_3, window_bounds = array<i64: 128, 384>}, {pipeline_mode = #tpu.pipeline_mode<synchronous>, transform_indices = @transform_4, window_bounds = array<i64: 128, 128>}, {pipeline_mode = #tpu.pipeline_mode<synchronous>, transform_indices = @transform_5, window_bounds = array<i64: 128, 256>}, {pipeline_mode = #tpu.pipeline_mode<synchronous>, transform_indices = @transform_6, window_bounds = array<i64: 256, 128>}, {pipeline_mode = #tpu.pipeline_mode<synchronous>, transform_indices = @transform_7, window_bounds = array<i64: 8, 384>}, {transform_indices = @transform_8, window_bounds = array<i64: 8, 128>}]} {
    %c0 = arith.constant 0 : index
    %c0_0 = arith.constant 0 : index
    %0 = vector.load %arg1[%c0, %c0_0] : memref<8x128xf32, #tpu.memory_space<vmem>>, vector<8x128xf32>
    %c0_1 = arith.constant 0 : index
    %c0_2 = arith.constant 0 : index
    %1 = vector.load %arg2[%c0_1, %c0_2] : memref<32x128xf32, #tpu.memory_space<vmem>>, vector<32x128xf32>
    %c0_3 = arith.constant 0 : index
    %c0_4 = arith.constant 0 : index
    %2 = vector.load %arg3[%c0_3, %c0_4] : memref<32x8xf32, #tpu.memory_space<vmem>>, vector<32x8xf32>
    %c0_5 = arith.constant 0 : index
    %c0_6 = arith.constant 0 : index
    %3 = vector.load %arg8[%c0_5, %c0_6] : memref<8x384xf32, #tpu.memory_space<vmem>>, vector<8x384xf32>
    %4 = vector.extract_strided_slice %3 {offsets = [0, 0], sizes = [1, 384], strides = [1, 1]} : vector<8x384xf32> to vector<1x384xf32>
    %5 = vector.extract_strided_slice %3 {offsets = [1, 0], sizes = [1, 128], strides = [1, 1]} : vector<8x384xf32> to vector<1x128xf32>
    %6 = vector.extract_strided_slice %3 {offsets = [2, 0], sizes = [1, 128], strides = [1, 1]} : vector<8x384xf32> to vector<1x128xf32>
    %7 = vector.extract_strided_slice %3 {offsets = [3, 0], sizes = [1, 128], strides = [1, 1]} : vector<8x384xf32> to vector<1x128xf32>
    %8 = vector.extract_strided_slice %3 {offsets = [4, 0], sizes = [1, 256], strides = [1, 1]} : vector<8x384xf32> to vector<1x256xf32>
    %9 = vector.extract_strided_slice %3 {offsets = [5, 0], sizes = [1, 128], strides = [1, 1]} : vector<8x384xf32> to vector<1x128xf32>
    %10 = vector.extract_strided_slice %3 {offsets = [6, 0], sizes = [1, 128], strides = [1, 1]} : vector<8x384xf32> to vector<1x128xf32>
    %11 = vector.extract_strided_slice %3 {offsets = [7, 0], sizes = [1, 128], strides = [1, 1]} : vector<8x384xf32> to vector<1x128xf32>
    %12 = arith.truncf %0 : vector<8x128xf32> to vector<8x128xbf16>
    %c0_7 = arith.constant 0 : index
    %c0_8 = arith.constant 0 : index
    %13 = vector.load %arg4[%c0_7, %c0_8] : memref<128x384xbf16, #tpu.memory_space<vmem>>, vector<128x384xbf16>
    %cst = arith.constant dense<0.000000e+00> : vector<8x384xf32>
    %14 = tpu.matmul %12, %13, %cst {dimension_numbers = #tpu.dot_dimension_numbers<[1], [0], [0], [1], [0, 0, 1, 1], [], []>} : vector<8x128xbf16>, vector<128x384xbf16>, vector<8x384xf32> -> vector<8x384xf32>
    %15 = vector.broadcast %4 : vector<1x384xf32> to vector<8x384xf32>
    %16 = arith.addf %14, %15 : vector<8x384xf32>
    %17 = vector.extract_strided_slice %16 {offsets = [0, 0], sizes = [8, 128], strides = [1, 1]} : vector<8x384xf32> to vector<8x128xf32>
    %18 = vector.extract_strided_slice %16 {offsets = [0, 128], sizes = [8, 128], strides = [1, 1]} : vector<8x384xf32> to vector<8x128xf32>
    %19 = vector.extract_strided_slice %16 {offsets = [0, 256], sizes = [8, 128], strides = [1, 1]} : vector<8x384xf32> to vector<8x128xf32>
    %20 = tpu.concatenate %17, %17, %17, %17 in 0 : vector<8x128xf32>, vector<8x128xf32>, vector<8x128xf32>, vector<8x128xf32> -> vector<32x128xf32>
    %21 = arith.mulf %20, %1 : vector<32x128xf32>
    %cst_9 = arith.constant dense<0.000000e+00> : vector<32x8xf32>
    %22 = tpu.matmul %21, %18, %cst_9 {dimension_numbers = #tpu.dot_dimension_numbers<[1], [1], [0], [0], [0, 0, 1, 0], [], []>} : vector<32x128xf32>, vector<8x128xf32>, vector<32x8xf32> -> vector<32x8xf32>
    %cst_10 = arith.constant 0.176776692 : f32
    %23 = vector.broadcast %cst_10 : f32 to vector<32x8xf32>
    %24 = arith.mulf %22, %23 : vector<32x8xf32>
    %25 = arith.addf %24, %2 : vector<32x8xf32>
    %cst_11 = arith.constant dense<0xFF800000> : vector<32xf32>
    %26 = vector.multi_reduction <maximumf>, %25, %cst_11 [1] : vector<32x8xf32> to vector<32xf32>
    %27 = vector.shape_cast %26 : vector<32xf32> to vector<32x1xf32>
    %28 = vector.broadcast %27 : vector<32x1xf32> to vector<32x8xf32>
    %29 = arith.subf %25, %28 : vector<32x8xf32>
    %30 = math.exp %29 : vector<32x8xf32>
    %cst_12 = arith.constant dense<0.000000e+00> : vector<32xf32>
    %31 = vector.multi_reduction <add>, %30, %cst_12 [1] : vector<32x8xf32> to vector<32xf32>
    %32 = vector.shape_cast %31 : vector<32xf32> to vector<32x1xf32>
    %33 = tpu.reciprocal %32 : vector<32x1xf32> -> vector<32x1xf32>
    %34 = vector.broadcast %33 : vector<32x1xf32> to vector<32x8xf32>
    %35 = arith.mulf %30, %34 : vector<32x8xf32>
    %cst_13 = arith.constant dense<0.000000e+00> : vector<32x128xf32>
    %36 = tpu.matmul %35, %19, %cst_13 {dimension_numbers = #tpu.dot_dimension_numbers<[1], [0], [0], [1], [0, 0, 1, 1], [], []>} : vector<32x8xf32>, vector<8x128xf32>, vector<32x128xf32> -> vector<32x128xf32>
    %37 = arith.mulf %36, %1 : vector<32x128xf32>
    %38 = vector.shape_cast %37 : vector<32x128xf32> to vector<4x8x128xf32>
    %cst_14 = arith.constant dense<0.000000e+00> : vector<8x128xf32>
    %39 = vector.multi_reduction <add>, %38, %cst_14 [0] : vector<4x8x128xf32> to vector<8x128xf32>
    %40 = arith.truncf %39 : vector<8x128xf32> to vector<8x128xbf16>
    %c0_15 = arith.constant 0 : index
    %c0_16 = arith.constant 0 : index
    %41 = vector.load %arg5[%c0_15, %c0_16] : memref<128x128xbf16, #tpu.memory_space<vmem>>, vector<128x128xbf16>
    %cst_17 = arith.constant dense<0.000000e+00> : vector<8x128xf32>
    %42 = tpu.matmul %40, %41, %cst_17 {dimension_numbers = #tpu.dot_dimension_numbers<[1], [0], [0], [1], [0, 0, 1, 1], [], []>} : vector<8x128xbf16>, vector<128x128xbf16>, vector<8x128xf32> -> vector<8x128xf32>
    %43 = vector.broadcast %5 : vector<1x128xf32> to vector<8x128xf32>
    %44 = arith.addf %42, %43 : vector<8x128xf32>
    %45 = arith.addf %44, %0 : vector<8x128xf32>
    %cst_18 = arith.constant dense<0.000000e+00> : vector<8xf32>
    %46 = vector.multi_reduction <add>, %45, %cst_18 [1] : vector<8x128xf32> to vector<8xf32>
    %47 = vector.shape_cast %46 : vector<8xf32> to vector<8x1xf32>
    %cst_19 = arith.constant 1.280000e+02 : f32
    %48 = vector.broadcast %cst_19 : f32 to vector<8x1xf32>
    %49 = arith.divf %47, %48 : vector<8x1xf32>
    %50 = vector.broadcast %49 : vector<8x1xf32> to vector<8x128xf32>
    %51 = arith.subf %45, %50 : vector<8x128xf32>
    %52 = arith.mulf %51, %51 : vector<8x128xf32>
    %cst_20 = arith.constant dense<0.000000e+00> : vector<8xf32>
    %53 = vector.multi_reduction <add>, %52, %cst_20 [1] : vector<8x128xf32> to vector<8xf32>
    %54 = vector.shape_cast %53 : vector<8xf32> to vector<8x1xf32>
    %cst_21 = arith.constant 1.280000e+02 : f32
    %55 = vector.broadcast %cst_21 : f32 to vector<8x1xf32>
    %56 = arith.divf %54, %55 : vector<8x1xf32>
    %57 = vector.broadcast %49 : vector<8x1xf32> to vector<8x128xf32>
    %58 = arith.subf %45, %57 : vector<8x128xf32>
    %cst_22 = arith.constant 9.99999974E-6 : f32
    %59 = vector.broadcast %cst_22 : f32 to vector<8x1xf32>
    %60 = arith.addf %56, %59 : vector<8x1xf32>
    %61 = math.rsqrt %60 : vector<8x1xf32>
    %62 = vector.broadcast %61 : vector<8x1xf32> to vector<8x128xf32>
    %63 = arith.mulf %58, %62 : vector<8x128xf32>
    %64 = vector.broadcast %6 : vector<1x128xf32> to vector<8x128xf32>
    %65 = arith.mulf %64, %63 : vector<8x128xf32>
    %66 = vector.broadcast %7 : vector<1x128xf32> to vector<8x128xf32>
    %67 = arith.addf %65, %66 : vector<8x128xf32>
    %68 = arith.truncf %67 : vector<8x128xf32> to vector<8x128xbf16>
    %c0_23 = arith.constant 0 : index
    %c0_24 = arith.constant 0 : index
    %69 = vector.load %arg6[%c0_23, %c0_24] : memref<128x256xbf16, #tpu.memory_space<vmem>>, vector<128x256xbf16>
    %cst_25 = arith.constant dense<0.000000e+00> : vector<8x256xf32>
    %70 = tpu.matmul %68, %69, %cst_25 {dimension_numbers = #tpu.dot_dimension_numbers<[1], [0], [0], [1], [0, 0, 1, 1], [], []>} : vector<8x128xbf16>, vector<128x256xbf16>, vector<8x256xf32> -> vector<8x256xf32>
    %71 = vector.broadcast %8 : vector<1x256xf32> to vector<8x256xf32>
    %72 = arith.addf %70, %71 : vector<8x256xf32>
    %cst_26 = arith.constant 0.000000e+00 : f32
    %73 = vector.broadcast %cst_26 : f32 to vector<8x256xf32>
    %74 = arith.maximumf %72, %73 : vector<8x256xf32>
    %75 = arith.truncf %74 : vector<8x256xf32> to vector<8x256xbf16>
    %c0_27 = arith.constant 0 : index
    %c0_28 = arith.constant 0 : index
    %76 = vector.load %arg7[%c0_27, %c0_28] : memref<256x128xbf16, #tpu.memory_space<vmem>>, vector<256x128xbf16>
    %cst_29 = arith.constant dense<0.000000e+00> : vector<8x128xf32>
    %77 = tpu.matmul %75, %76, %cst_29 {dimension_numbers = #tpu.dot_dimension_numbers<[1], [0], [0], [1], [0, 0, 1, 1], [], []>} : vector<8x256xbf16>, vector<256x128xbf16>, vector<8x128xf32> -> vector<8x128xf32>
    %78 = vector.broadcast %9 : vector<1x128xf32> to vector<8x128xf32>
    %79 = arith.addf %77, %78 : vector<8x128xf32>
    %80 = arith.addf %79, %67 : vector<8x128xf32>
    %cst_30 = arith.constant dense<0.000000e+00> : vector<8xf32>
    %81 = vector.multi_reduction <add>, %80, %cst_30 [1] : vector<8x128xf32> to vector<8xf32>
    %82 = vector.shape_cast %81 : vector<8xf32> to vector<8x1xf32>
    %cst_31 = arith.constant 1.280000e+02 : f32
    %83 = vector.broadcast %cst_31 : f32 to vector<8x1xf32>
    %84 = arith.divf %82, %83 : vector<8x1xf32>
    %85 = vector.broadcast %84 : vector<8x1xf32> to vector<8x128xf32>
    %86 = arith.subf %80, %85 : vector<8x128xf32>
    %87 = arith.mulf %86, %86 : vector<8x128xf32>
    %cst_32 = arith.constant dense<0.000000e+00> : vector<8xf32>
    %88 = vector.multi_reduction <add>, %87, %cst_32 [1] : vector<8x128xf32> to vector<8xf32>
    %89 = vector.shape_cast %88 : vector<8xf32> to vector<8x1xf32>
    %cst_33 = arith.constant 1.280000e+02 : f32
    %90 = vector.broadcast %cst_33 : f32 to vector<8x1xf32>
    %91 = arith.divf %89, %90 : vector<8x1xf32>
    %92 = vector.broadcast %84 : vector<8x1xf32> to vector<8x128xf32>
    %93 = arith.subf %80, %92 : vector<8x128xf32>
    %cst_34 = arith.constant 9.99999974E-6 : f32
    %94 = vector.broadcast %cst_34 : f32 to vector<8x1xf32>
    %95 = arith.addf %91, %94 : vector<8x1xf32>
    %96 = math.rsqrt %95 : vector<8x1xf32>
    %97 = vector.broadcast %96 : vector<8x1xf32> to vector<8x128xf32>
    %98 = arith.mulf %93, %97 : vector<8x128xf32>
    %99 = vector.broadcast %10 : vector<1x128xf32> to vector<8x128xf32>
    %100 = arith.mulf %99, %98 : vector<8x128xf32>
    %101 = vector.broadcast %11 : vector<1x128xf32> to vector<8x128xf32>
    %102 = arith.addf %100, %101 : vector<8x128xf32>
    %c0_35 = arith.constant 0 : index
    %c0_36 = arith.constant 0 : index
    %103 = vector.load %arg9[%c0_35, %c0_36] : memref<8x128xf32, #tpu.memory_space<vmem>>, vector<8x128xf32>
    tpu.vector_store %arg9[%c0_35, %c0_36], %102 {strides = array<i32>} : memref<8x128xf32, #tpu.memory_space<vmem>>, vector<8x128xf32>,
    return
  }
  func.func @transform_0(%arg0: i32) -> (i32, i32) {
    %c0_i32 = arith.constant 0 : i32
    %c0_i32_0 = arith.constant 0 : i32
    return %arg0, %c0_i32 : i32, i32
  }
  func.func @transform_1(%arg0: i32) -> (i32, i32) {
    %c0_i32 = arith.constant 0 : i32
    %c0_i32_0 = arith.constant 0 : i32
    %c0_i32_1 = arith.constant 0 : i32
    return %c0_i32, %c0_i32_0 : i32, i32
  }
  func.func @transform_2(%arg0: i32) -> (i32, i32) {
    %c0_i32 = arith.constant 0 : i32
    %c0_i32_0 = arith.constant 0 : i32
    %c0_i32_1 = arith.constant 0 : i32
    return %c0_i32, %c0_i32_0 : i32, i32
  }
  func.func @transform_3(%arg0: i32) -> (i32, i32) {
    %c0_i32 = arith.constant 0 : i32
    %c0_i32_0 = arith.constant 0 : i32
    %c0_i32_1 = arith.constant 0 : i32
    return %c0_i32, %c0_i32_0 : i32, i32
  }
  func.func @transform_4(%arg0: i32) -> (i32, i32) {
    %c0_i32 = arith.constant 0 : i32
    %c0_i32_0 = arith.constant 0 : i32
    %c0_i32_1 = arith.constant 0 : i32
    return %c0_i32, %c0_i32_0 : i32, i32
  }
  func.func @transform_5(%arg0: i32) -> (i32, i32) {
    %c0_i32 = arith.constant 0 : i32
    %c0_i32_0 = arith.constant 0 : i32
    %c0_i32_1 = arith.constant 0 : i32
    return %c0_i32, %c0_i32_0 : i32, i32
  }
  func.func @transform_6(%arg0: i32) -> (i32, i32) {
    %c0_i32 = arith.constant 0 : i32
    %c0_i32_0 = arith.constant 0 : i32
    %c0_i32_1 = arith.constant 0 : i32
    return %c0_i32, %c0_i32_0 : i32, i32
  }
  func.func @transform_7(%arg0: i32) -> (i32, i32) {
    %c0_i32 = arith.constant 0 : i32
    %c0_i32_0 = arith.constant 0 : i32
    %c0_i32_1 = arith.constant 0 : i32
    return %c0_i32, %c0_i32_0 : i32, i32
  }
  func.func @transform_8(%arg0: i32) -> (i32, i32) {
    %c0_i32 = arith.constant 0 : i32
    %c0_i32_0 = arith.constant 0 : i32
    return %arg0, %c0_i32 : i32, i32
  }
}

</mosaic_0001>

<llo_original>
// kernel: tpu_custom_call.1
$region0: #{tpu_custom_call.1}
  #allocation0 [shape = 'u32[]', space=smem, size = 0x4, offset = 0x4, fixed_abs, tag = 'smem constant byte address 0x4 - core index']
  #allocation1 [shape = 'u32[72,128]{1,0:T(1,128)}', space=vmem, size = 0x9000, scoped, tag = 'internal scratch']
  %s0 = inlined_call_operand.hbm [shape: f32[16,128], index: 0, kind: input, shape index: {}]
  %s1 = inlined_call_operand.vmem [shape: f32[32,128], index: 1, kind: input, shape index: {}]
  %s2 = inlined_call_operand.vmem [shape: f32[32,8], index: 2, kind: input, shape index: {}]
  %s3 = inlined_call_operand.hbm [shape: bf16[128,384], index: 3, kind: input, shape index: {}]
  %s4 = inlined_call_operand.hbm [shape: bf16[128,128], index: 4, kind: input, shape index: {}]
  %s5 = inlined_call_operand.hbm [shape: bf16[128,256], index: 5, kind: input, shape index: {}]
  %s6 = inlined_call_operand.hbm [shape: bf16[256,128], index: 6, kind: input, shape index: {}]
  %s7 = inlined_call_operand.hbm [shape: f32[8,384], index: 7, kind: input, shape index: {}]
  %s8 = inlined_call_operand.hbm [shape: f32[16,128], index: 8, kind: output, shape index: {}]
  %s9 = sld [smem:[#allocation0]]
  $region89: #{tpu_custom_call.1} parent=0
    _
  %s11 = ssub.s32 1, %s9
  %s12 = scalar_select 0, %s11, %s9
  $region1: #{tpu_custom_call.1} parent=0
    #allocation2 [shape = 'u8[8192]{0}', space=vmem, size = 0x2000, scoped, tag = 'input window, operand 0']
    #allocation3 [shape = 's32[2]{0}', space=sflag, size = 0x8, scoped, tag = 'scoped memory for tpu_custom_call.1']
    #allocation4 [shape = 's32[2]{0}', space=sflag, size = 0x8, scoped, tag = 'scoped memory for tpu_custom_call.1']
    #allocation5 [shape = 'u8[98304]{0}', space=vmem, size = 0x18000, scoped, tag = 'input window, operand 3, single buffered']
    #allocation6 [shape = 's32[1]{0}', space=sflag, size = 0x4, scoped, tag = 'scoped memory for tpu_custom_call.1']
    #allocation7 [shape = 'u8[32768]{0}', space=vmem, size = 0x8000, scoped, tag = 'input window, operand 4, single buffered']
    #allocation8 [shape = 'u8[65536]{0}', space=vmem, size = 0x10000, scoped, tag = 'input window, operand 5, single buffered']
    #allocation9 [shape = 's32[1]{0}', space=sflag, size = 0x4, scoped, tag = 'scoped memory for tpu_custom_call.1']
    #allocation10 [shape = 'u8[65536]{0}', space=vmem, size = 0x10000, scoped, tag = 'input window, operand 6, single buffered']
    #allocation11 [shape = 'u8[12288]{0}', space=vmem, size = 0x3000, scoped, tag = 'input window, operand 7, single buffered']
    #allocation12 [shape = 's32[1]{0}', space=sflag, size = 0x4, scoped, tag = 'scoped memory for tpu_custom_call.1']
    #allocation13 [shape = 'u8[8192]{0}', space=vmem, size = 0x2000, scoped, tag = 'output window, operand 0']
    %13 = vsyncpa [#allocation3], 0
    %s14 = scalar_lea.sflag [#allocation3], 1
    %15 = vsyncpa %s14, 0
    %16 = vsyncpa [#allocation6], 0
    %17 = vsyncpa [#allocation9], 0
    %18 = vsyncpa [#allocation12], 0
    %19 = vsyncpa [#allocation4], 0
    %s20 = scalar_lea.sflag [#allocation4], 1
    %21 = vsyncpa %s20, 0
    loop: start=0, step=1, limit=4
    $region2: #{tpu_custom_call.1} parent=1 // loop_pre_header
      _
    $region3: #{tpu_custom_call.1} parent=1 // loop_header
      %s23 = sphi 0, %s27
      %p24 = scmp.ge.s32.totalorder %s23, 4
      %s33 = sphi 0, %s35
      %s36 = sphi 0, %s33
      %s37 = sphi 0, %s36
      %s53 = sphi 0, %s37
      %s57 = sphi 0, %s57
      %s59 = sphi 0, %s57
      %s60 = sphi 0, %s59
      %s74 = sphi 0, %s60
      %s78 = sphi 0, %s78
      %s80 = sphi 0, %s78
      %s81 = sphi 0, %s80
      %s95 = sphi 0, %s81
      %s99 = sphi 0, %s99
      %s101 = sphi 0, %s99
      %s102 = sphi 0, %s101
      %s116 = sphi 0, %s102
      %s120 = sphi 0, %s120
      %s122 = sphi 0, %s120
      %s123 = sphi 0, %s122
      %s137 = sphi 0, %s123
      %s141 = sphi 0, %s141
      %s143 = sphi 0, %s141
      %s144 = sphi 0, %s143
      %s158 = sphi 0, %s144
      %s162 = sphi 0, %s162
      %s164 = sphi 0, %s162
      %s165 = sphi 0, %s164
      %s179 = sphi 0, %s165
      %s183 = sphi 0, %s183
      %s185 = sphi 0, %s183
      %s186 = sphi 0, %s185
      %s200 = sphi 0, %s186
      %s206 = sphi 0, %s208
      %s209 = sphi 0, %s206
      %s210 = sphi 0, %s209
      %s226 = sphi 0, %s210
    $region4: #{tpu_custom_call.1} parent=1 // loop_header_branch
      %26 = sbr.rel (%p24) target = $region8
    $region5: #{tpu_custom_call.1} parent=1 // loop_body
      %s28 = ssub.s32 %s23, 1
      %s29 = ssub.s32 %s23, 2
      %s30 = sadd.s32 %s23, 1
      %s31 = ssub.s32 %s23, %s30
      %p32 = scmp.eq.s32.totalorder %s31, 0
      %s34 = sadd.s32 %s33, 1
      %s35 = scalar_select %p32, %s33, %s34
      %p38 = pneg %p32
      %p39 = scmp.eq.s32.totalorder %s23, 1
      %p40 = por %p38, %p39
      %p41 = scmp.ne.s32.totalorder %s33, %s36
      %p42 = scmp.eq.s32.totalorder %s23, 0
      %p43 = por %p41, %p42
      %p44 = scmp.ne.s32.totalorder %s33, %s36
      %p45 = scmp.eq.s32.totalorder %s28, 1
      %p46 = por %p44, %p45
      %p47 = scmp.ne.s32.totalorder %s36, %s37
      %p48 = scmp.eq.s32.totalorder %s28, 0
      %p49 = por %p47, %p48
      %p50 = scmp.ne.s32.totalorder %s36, %s37
      %p51 = scmp.eq.s32.totalorder %s29, 1
      %p52 = por %p50, %p51
      %p54 = scmp.ne.s32.totalorder %s37, %s53
      %p55 = scmp.eq.s32.totalorder %s29, 0
      %p56 = por %p54, %p55
      %s58 = sadd.s32 %s57, 1
      %p61 = scmp.eq.s32.totalorder %s23, 1
      %p62 = scmp.ne.s32.totalorder %s57, %s59
      %p63 = scmp.eq.s32.totalorder %s23, 0
      %p64 = por %p62, %p63
      %p65 = scmp.ne.s32.totalorder %s57, %s59
      %p66 = scmp.eq.s32.totalorder %s28, 1
      %p67 = por %p65, %p66
      %p68 = scmp.ne.s32.totalorder %s59, %s60
      %p69 = scmp.eq.s32.totalorder %s28, 0
      %p70 = por %p68, %p69
      %p71 = scmp.ne.s32.totalorder %s59, %s60
      %p72 = scmp.eq.s32.totalorder %s29, 1
      %p73 = por %p71, %p72
      %p75 = scmp.ne.s32.totalorder %s60, %s74
      %p76 = scmp.eq.s32.totalorder %s29, 0
      %p77 = por %p75, %p76
      %s79 = sadd.s32 %s78, 1
      %p82 = scmp.eq.s32.totalorder %s23, 1
      %p83 = scmp.ne.s32.totalorder %s78, %s80
      %p84 = scmp.eq.s32.totalorder %s23, 0
      %p85 = por %p83, %p84
      %p86 = scmp.ne.s32.totalorder %s78, %s80
      %p87 = scmp.eq.s32.totalorder %s28, 1
      %p88 = por %p86, %p87
      %p89 = scmp.ne.s32.totalorder %s80, %s81
      %p90 = scmp.eq.s32.totalorder %s28, 0
      %p91 = por %p89, %p90
      %p92 = scmp.ne.s32.totalorder %s80, %s81
      %p93 = scmp.eq.s32.totalorder %s29, 1
      %p94 = por %p92, %p93
      %p96 = scmp.ne.s32.totalorder %s81, %s95
      %p97 = scmp.eq.s32.totalorder %s29, 0
      %p98 = por %p96, %p97
      %s100 = sadd.s32 %s99, 1
      %p103 = scmp.eq.s32.totalorder %s23, 1
      %p104 = scmp.ne.s32.totalorder %s99, %s101
      %p105 = scmp.eq.s32.totalorder %s23, 0
      %p106 = por %p104, %p105
      %p107 = scmp.ne.s32.totalorder %s99, %s101
      %p108 = scmp.eq.s32.totalorder %s28, 1
      %p109 = por %p107, %p108
      %p110 = scmp.ne.s32.totalorder %s101, %s102
      %p111 = scmp.eq.s32.totalorder %s28, 0
      %p112 = por %p110, %p111
      %p113 = scmp.ne.s32.totalorder %s101, %s102
      %p114 = scmp.eq.s32.totalorder %s29, 1
      %p115 = por %p113, %p114
      %p117 = scmp.ne.s32.totalorder %s102, %s116
      %p118 = scmp.eq.s32.totalorder %s29, 0
      %p119 = por %p117, %p118
      %s121 = sadd.s32 %s120, 1
      %p124 = scmp.eq.s32.totalorder %s23, 1
      %p125 = scmp.ne.s32.totalorder %s120, %s122
      %p126 = scmp.eq.s32.totalorder %s23, 0
      %p127 = por %p125, %p126
      %p128 = scmp.ne.s32.totalorder %s120, %s122
      %p129 = scmp.eq.s32.totalorder %s28, 1
      %p130 = por %p128, %p129
      %p131 = scmp.ne.s32.totalorder %s122, %s123
      %p132 = scmp.eq.s32.totalorder %s28, 0
      %p133 = por %p131, %p132
      %p134 = scmp.ne.s32.totalorder %s122, %s123
      %p135 = scmp.eq.s32.totalorder %s29, 1
      %p136 = por %p134, %p135
      %p138 = scmp.ne.s32.totalorder %s123, %s137
      %p139 = scmp.eq.s32.totalorder %s29, 0
      %p140 = por %p138, %p139
      %s142 = sadd.s32 %s141, 1
      %p145 = scmp.eq.s32.totalorder %s23, 1
      %p146 = scmp.ne.s32.totalorder %s141, %s143
      %p147 = scmp.eq.s32.totalorder %s23, 0
      %p148 = por %p146, %p147
      %p149 = scmp.ne.s32.totalorder %s141, %s143
      %p150 = scmp.eq.s32.totalorder %s28, 1
      %p151 = por %p149, %p150
      %p152 = scmp.ne.s32.totalorder %s143, %s144
      %p153 = scmp.eq.s32.totalorder %s28, 0
      %p154 = por %p152, %p153
      %p155 = scmp.ne.s32.totalorder %s143, %s144
      %p156 = scmp.eq.s32.totalorder %s29, 1
      %p157 = por %p155, %p156
      %p159 = scmp.ne.s32.totalorder %s144, %s158
      %p160 = scmp.eq.s32.totalorder %s29, 0
      %p161 = por %p159, %p160
      %s163 = sadd.s32 %s162, 1
      %p166 = scmp.eq.s32.totalorder %s23, 1
      %p167 = scmp.ne.s32.totalorder %s162, %s164
      %p168 = scmp.eq.s32.totalorder %s23, 0
      %p169 = por %p167, %p168
      %p170 = scmp.ne.s32.totalorder %s162, %s164
      %p171 = scmp.eq.s32.totalorder %s28, 1
      %p172 = por %p170, %p171
      %p173 = scmp.ne.s32.totalorder %s164, %s165
      %p174 = scmp.eq.s32.totalorder %s28, 0
      %p175 = por %p173, %p174
      %p176 = scmp.ne.s32.totalorder %s164, %s165
      %p177 = scmp.eq.s32.totalorder %s29, 1
      %p178 = por %p176, %p177
      %p180 = scmp.ne.s32.totalorder %s165, %s179
      %p181 = scmp.eq.s32.totalorder %s29, 0
      %p182 = por %p180, %p181
      %s184 = sadd.s32 %s183, 1
      %p187 = scmp.eq.s32.totalorder %s23, 1
      %p188 = scmp.ne.s32.totalorder %s183, %s185
      %p189 = scmp.eq.s32.totalorder %s23, 0
      %p190 = por %p188, %p189
      %p191 = scmp.ne.s32.totalorder %s183, %s185
      %p192 = scmp.eq.s32.totalorder %s28, 1
      %p193 = por %p191, %p192
      %p194 = scmp.ne.s32.totalorder %s185, %s186
      %p195 = scmp.eq.s32.totalorder %s28, 0
      %p196 = por %p194, %p195
      %p197 = scmp.ne.s32.totalorder %s185, %s186
      %p198 = scmp.eq.s32.totalorder %s29, 1
      %p199 = por %p197, %p198
      %p201 = scmp.ne.s32.totalorder %s186, %s200
      %p202 = scmp.eq.s32.totalorder %s29, 0
      %p203 = por %p201, %p202
      %s204 = ssub.s32 %s23, %s30
      %p205 = scmp.eq.s32.totalorder %s204, 0
      %s207 = sadd.s32 %s206, 1
      %s208 = scalar_select %p205, %s206, %s207
      %p211 = pneg %p205
      %p212 = scmp.eq.s32.totalorder %s23, 1
      %p213 = por %p211, %p212
      %p214 = scmp.ne.s32.totalorder %s206, %s209
      %p215 = scmp.eq.s32.totalorder %s23, 0
      %p216 = por %p214, %p215
      %p217 = scmp.ne.s32.totalorder %s206, %s209
      %p218 = scmp.eq.s32.totalorder %s28, 1
      %p219 = por %p217, %p218
      %p220 = scmp.ne.s32.totalorder %s209, %s210
      %p221 = scmp.eq.s32.totalorder %s28, 0
      %p222 = por %p220, %p221
      %p223 = scmp.ne.s32.totalorder %s209, %s210
      %p224 = scmp.eq.s32.totalorder %s29, 1
      %p225 = por %p223, %p224
      %p227 = scmp.ne.s32.totalorder %s210, %s226
      %p228 = scmp.eq.s32.totalorder %s29, 0
      %p229 = por %p227, %p228
      %p230 = scmp.le.s32.totalorder 1, %s23
      %p231 = scmp.lt.s32.totalorder %s23, 3
      %p232 = pnand %p230, %p231
      %p233 = pneg %p232
      // Predicated region
      $region9: #{tpu_custom_call.1} parent=5 // pred_check
        _
      $region10: #{tpu_custom_call.1} parent=5 // pred_check_branch
        %235 = sbr.rel (%p232) target = $region12
      $region11: #{tpu_custom_call.1} parent=5 // pred_region
        %s236 = ssub.s32 %s23, 1
        // Predicated region
        $region13: #{tpu_custom_call.1} parent=11 // pred_check
          %p237 = pneg %p70
        $region14: #{tpu_custom_call.1} parent=11 // pred_check_branch
          %239 = sbr.rel (%p237) target = $region16
        $region15: #{tpu_custom_call.1} parent=11 // pred_region
          _
        $region16: #{tpu_custom_call.1} parent=11 // pred_fallthru
          _
        // Predicated region
        $region17: #{tpu_custom_call.1} parent=11 // pred_check
          %p240 = pneg %p91
        $region18: #{tpu_custom_call.1} parent=11 // pred_check_branch
          %242 = sbr.rel (%p240) target = $region20
        $region19: #{tpu_custom_call.1} parent=11 // pred_region
          _
        $region20: #{tpu_custom_call.1} parent=11 // pred_fallthru
          _
        // Predicated region
        $region21: #{tpu_custom_call.1} parent=11 // pred_check
          %p243 = pneg %p112
        $region22: #{tpu_custom_call.1} parent=11 // pred_check_branch
          %245 = sbr.rel (%p243) target = $region24
        $region23: #{tpu_custom_call.1} parent=11 // pred_region
          %247 = vsyncadd [#allocation6], 0
          %s248 = sshll.u32 %s3, 4
          %s249 = int_to_ptr.hbm [resolvable:$true] %s248
          %s250 = sshll.u32 [#allocation5], 4
          %s251 = int_to_ptr.vmem [resolvable:$true] %s250
          %256 = dma.hbm_to_vmem [thread:$0]  %s249, 3072, %s251, [#allocation6], 192, 192, 12
        $region24: #{tpu_custom_call.1} parent=11 // pred_fallthru
          _
        // Predicated region
        $region25: #{tpu_custom_call.1} parent=11 // pred_check
          %p257 = pneg %p133
        $region26: #{tpu_custom_call.1} parent=11 // pred_check_branch
          %259 = sbr.rel (%p257) target = $region28
        $region27: #{tpu_custom_call.1} parent=11 // pred_region
          %261 = vsyncadd [#allocation6], 0
          %s262 = sshll.u32 %s4, 4
          %s263 = int_to_ptr.hbm [resolvable:$true] %s262
          %s264 = sshll.u32 [#allocation7], 4
          %s265 = int_to_ptr.vmem [resolvable:$true] %s264
          %270 = dma.hbm_to_vmem [thread:$0]  %s263, 1024, %s265, [#allocation6], 64, 64, 4
        $region28: #{tpu_custom_call.1} parent=11 // pred_fallthru
          _
        // Predicated region
        $region29: #{tpu_custom_call.1} parent=11 // pred_check
          %p271 = pneg %p154
        $region30: #{tpu_custom_call.1} parent=11 // pred_check_branch
          %273 = sbr.rel (%p271) target = $region32
        $region31: #{tpu_custom_call.1} parent=11 // pred_region
          %275 = vsyncadd [#allocation9], 0
          %s276 = sshll.u32 %s5, 4
          %s277 = int_to_ptr.hbm [resolvable:$true] %s276
          %s278 = sshll.u32 [#allocation8], 4
          %s279 = int_to_ptr.vmem [resolvable:$true] %s278
          %284 = dma.hbm_to_vmem [thread:$0]  %s277, 2048, %s279, [#allocation9], 128, 128, 8
        $region32: #{tpu_custom_call.1} parent=11 // pred_fallthru
          _
        // Predicated region
        $region33: #{tpu_custom_call.1} parent=11 // pred_check
          %p285 = pneg %p175
        $region34: #{tpu_custom_call.1} parent=11 // pred_check_branch
          %287 = sbr.rel (%p285) target = $region36
        $region35: #{tpu_custom_call.1} parent=11 // pred_region
          %289 = vsyncadd [#allocation9], 0
          %s290 = sshll.u32 %s6, 4
          %s291 = int_to_ptr.hbm [resolvable:$true] %s290
          %s292 = sshll.u32 [#allocation10], 4
          %s293 = int_to_ptr.vmem [resolvable:$true] %s292
          %298 = dma.hbm_to_vmem [thread:$0]  %s291, 2048, %s293, [#allocation9], 64, 64, 4
        $region36: #{tpu_custom_call.1} parent=11 // pred_fallthru
          _
        // Predicated region
        $region37: #{tpu_custom_call.1} parent=11 // pred_check
          %p299 = pneg %p196
        $region38: #{tpu_custom_call.1} parent=11 // pred_check_branch
          %301 = sbr.rel (%p299) target = $region40
        $region39: #{tpu_custom_call.1} parent=11 // pred_region
          %303 = vsyncadd [#allocation12], 0
          %s305 = sshll.u32 %s7, 4
          %s306 = int_to_ptr.hbm [resolvable:$true] %s305
          %s307 = sshll.u32 [#allocation11], 4
          %s308 = int_to_ptr.vmem [resolvable:$true] %s307
          %310 = dma.hbm_to_vmem [thread:$0]  %s306, 384, %s308, [#allocation12]
        $region40: #{tpu_custom_call.1} parent=11 // pred_fallthru
          _
      $region12: #{tpu_custom_call.1} parent=5 // pred_fallthru
        _
      %p311 = scmp.lt.s32.totalorder %s23, 2
      // Predicated region
      $region41: #{tpu_custom_call.1} parent=5 // pred_check
        %p312 = pneg %p311
      $region42: #{tpu_custom_call.1} parent=5 // pred_check_branch
        %314 = sbr.rel (%p312) target = $region44
      $region43: #{tpu_custom_call.1} parent=5 // pred_region
        // Predicated region
        $region45: #{tpu_custom_call.1} parent=43 // pred_check
          %p315 = pneg %p43
        $region46: #{tpu_custom_call.1} parent=43 // pred_check_branch
          %317 = sbr.rel (%p315) target = $region48
        $region47: #{tpu_custom_call.1} parent=43 // pred_region
          %s318 = sand.u32 %s33, 1
          %s319 = scalar_lea.sflag [#allocation3], %s318
          %s320 = sand.u32 %s33, 1
          %s321 = smul.addr %s320, 8
          %s322 = scalar_lea.vmem [#allocation2], %s321
          %324 = vsyncadd %s319, 0
          %s325 = smul.addr %s23, 8
          %s326 = scalar_lea.hbm %s0, %s325
          %s328 = sshll.u32 %s326, 4
          %s329 = int_to_ptr.hbm [resolvable:$true] %s328
          %s330 = sshll.u32 %s322, 4
          %s331 = int_to_ptr.vmem [resolvable:$true] %s330
          %333 = dma.hbm_to_vmem [thread:$0]  %s329, 128, %s331, %s319
        $region48: #{tpu_custom_call.1} parent=43 // pred_fallthru
          _
      $region44: #{tpu_custom_call.1} parent=5 // pred_fallthru
        _
      %p334 = scmp.le.s32.totalorder 1, %s23
      %p335 = scmp.lt.s32.totalorder %s23, 3
      %p336 = pnand %p334, %p335
      %p337 = pneg %p336
      // Predicated region
      $region49: #{tpu_custom_call.1} parent=5 // pred_check
        _
      $region50: #{tpu_custom_call.1} parent=5 // pred_check_branch
        %339 = sbr.rel (%p336) target = $region52
      $region51: #{tpu_custom_call.1} parent=5 // pred_region
        %s340 = ssub.s32 %s23, 1
        %s341 = sand.u32 %s36, 1
        %s342 = scalar_lea.sflag [#allocation3], %s341
        %s343 = sand.u32 %s36, 1
        %s344 = smul.addr %s343, 8
        %s345 = scalar_lea.vmem [#allocation2], %s344
        // Predicated region
        $region53: #{tpu_custom_call.1} parent=51 // pred_check
          %p346 = pneg %p49
        $region54: #{tpu_custom_call.1} parent=51 // pred_check_branch
          %348 = sbr.rel (%p346) target = $region56
        $region55: #{tpu_custom_call.1} parent=51 // pred_region
          %350 = dma.done %s342, 128
        $region56: #{tpu_custom_call.1} parent=51 // pred_fallthru
          _
        // Predicated region
        $region57: #{tpu_custom_call.1} parent=51 // pred_check
          %p351 = pneg %p112
        $region58: #{tpu_custom_call.1} parent=51 // pred_check_branch
          %353 = sbr.rel (%p351) target = $region60
        $region59: #{tpu_custom_call.1} parent=51 // pred_region
          %355 = dma.done [#allocation6], 3072
        $region60: #{tpu_custom_call.1} parent=51 // pred_fallthru
          _
        // Predicated region
        $region61: #{tpu_custom_call.1} parent=51 // pred_check
          %p356 = pneg %p133
        $region62: #{tpu_custom_call.1} parent=51 // pred_check_branch
          %358 = sbr.rel (%p356) target = $region64
        $region63: #{tpu_custom_call.1} parent=51 // pred_region
          %360 = dma.done [#allocation6], 1024
        $region64: #{tpu_custom_call.1} parent=51 // pred_fallthru
          _
        // Predicated region
        $region65: #{tpu_custom_call.1} parent=51 // pred_check
          %p361 = pneg %p154
        $region66: #{tpu_custom_call.1} parent=51 // pred_check_branch
          %363 = sbr.rel (%p361) target = $region68
        $region67: #{tpu_custom_call.1} parent=51 // pred_region
          %365 = dma.done [#allocation9], 2048
        $region68: #{tpu_custom_call.1} parent=51 // pred_fallthru
          _
        // Predicated region
        $region69: #{tpu_custom_call.1} parent=51 // pred_check
          %p366 = pneg %p175
        $region70: #{tpu_custom_call.1} parent=51 // pred_check_branch
          %368 = sbr.rel (%p366) target = $region72
        $region71: #{tpu_custom_call.1} parent=51 // pred_region
          %370 = dma.done [#allocation9], 2048
        $region72: #{tpu_custom_call.1} parent=51 // pred_fallthru
          _
        // Predicated region
        $region73: #{tpu_custom_call.1} parent=51 // pred_check
          %p371 = pneg %p196
        $region74: #{tpu_custom_call.1} parent=51 // pred_check_branch
          %373 = sbr.rel (%p371) target = $region76
        $region75: #{tpu_custom_call.1} parent=51 // pred_region
          %375 = dma.done [#allocation12], 384
        $region76: #{tpu_custom_call.1} parent=51 // pred_fallthru
          _
        %s376 = sand.u32 %s36, 1
        %s377 = scalar_lea.sflag [#allocation3], %s376
        %s378 = sand.u32 %s36, 1
        %s379 = smul.addr %s378, 8
        %s380 = scalar_lea.vmem [#allocation2], %s379
        %p381 = pneg %p49
        %p382 = pneg %p46
        %p383 = pneg %p70
        %p384 = pneg %p67
        %p385 = pneg %p91
        %p386 = pneg %p88
        %p387 = pneg %p112
        %p388 = pneg %p109
        %p389 = pneg %p133
        %p390 = pneg %p130
        %p391 = pneg %p154
        %p392 = pneg %p151
        %p393 = pneg %p175
        %p394 = pneg %p172
        %p395 = pneg %p196
        %p396 = pneg %p193
        %p397 = pneg %p222
        %p398 = pneg %p219
        %s399 = sand.u32 %s209, 1
        %s400 = scalar_lea.sflag [#allocation4], %s399
        %s401 = sand.u32 %s209, 1
        %s402 = smul.addr %s401, 8
        %s403 = scalar_lea.vmem [#allocation13], %s402
        %v404 = vld [vmem:[%s345] sm:$0xff]
        %v405 = vld [vmem:[%s1] sm:$0xff]
        %v406 = vld [vmem:[%s1 + $0x8] sm:$0xff]
        %v407 = vld [vmem:[%s1 + $0x10] sm:$0xff]
        %v408 = vld [vmem:[%s1 + $0x18] sm:$0xff]
        %v409 = vld [vmem:[%s2] sm:$0xff]
        %v410 = vld [vmem:[%s2 + $0x8] sm:$0xff]
        %v411 = vld [vmem:[%s2 + $0x10] sm:$0xff]
        %v412 = vld [vmem:[%s2 + $0x18] sm:$0xff]
        %v413 = vld [vmem:[#allocation11] sm:$0xff]
        %v414 = vld [vmem:[#allocation11 + $0x8] sm:$0xff]
        %v415 = vld [vmem:[#allocation11 + $0x10] sm:$0xff]
        %v416 = vpack.c.bf16 %v404, %v404
        %v417 = vld [vmem:[#allocation5] sm:$0xff]
        %v418 = vld [vmem:[#allocation5 + $0x8] sm:$0xf]
        %v419 = vld [vmem:[#allocation5 + $0xc] sm:$0xff]
        %v420 = vld [vmem:[#allocation5 + $0x14] sm:$0xf]
        %v421 = vld [vmem:[#allocation5 + $0x18] sm:$0xff]
        %v422 = vld [vmem:[#allocation5 + $0x20] sm:$0xf]
        %v423 = vld [vmem:[#allocation5 + $0x24] sm:$0xff]
        %v424 = vld [vmem:[#allocation5 + $0x2c] sm:$0xf]
        %v425 = vld [vmem:[#allocation5 + $0x30] sm:$0xff]
        %v426 = vld [vmem:[#allocation5 + $0x38] sm:$0xf]
        %v427 = vld [vmem:[#allocation5 + $0x3c] sm:$0xff]
        %v428 = vld [vmem:[#allocation5 + $0x44] sm:$0xf]
        %v429 = vld [vmem:[#allocation5 + $0x48] sm:$0xff]
        %v430 = vld [vmem:[#allocation5 + $0x50] sm:$0xf]
        %v431 = vld [vmem:[#allocation5 + $0x54] sm:$0xff]
        %v432 = vld [vmem:[#allocation5 + $0x5c] sm:$0xf]
        %v433 = vld [vmem:[#allocation5 + $0x60] sm:$0xff]
        %v434 = vld [vmem:[#allocation5 + $0x68] sm:$0xf]
        %v435 = vld [vmem:[#allocation5 + $0x6c] sm:$0xff]
        %v436 = vld [vmem:[#allocation5 + $0x74] sm:$0xf]
        %v437 = vld [vmem:[#allocation5 + $0x78] sm:$0xff]
        %v438 = vld [vmem:[#allocation5 + $0x80] sm:$0xf]
        %v439 = vld [vmem:[#allocation5 + $0x84] sm:$0xff]
        %v440 = vld [vmem:[#allocation5 + $0x8c] sm:$0xf]
        %v441 = vld [vmem:[#allocation5 + $0x90] sm:$0xff]
        %v442 = vld [vmem:[#allocation5 + $0x98] sm:$0xf]
        %v443 = vld [vmem:[#allocation5 + $0x9c] sm:$0xff]
        %v444 = vld [vmem:[#allocation5 + $0xa4] sm:$0xf]
        %v445 = vld [vmem:[#allocation5 + $0xa8] sm:$0xff]
        %v446 = vld [vmem:[#allocation5 + $0xb0] sm:$0xf]
        %v447 = vld [vmem:[#allocation5 + $0xb4] sm:$0xff]
        %v448 = vld [vmem:[#allocation5 + $0xbc] sm:$0xf]
        %v449 = vperm.slane %v413, 0
        %v450 = vperm.slane %v414, 0
        %v451 = vperm.slane %v415, 0
        %v484 = vunpack.c.l.b16 %v417
        %v485 = vunpack.c.h.b16 %v417
        %v486 = vunpack.c.l.b16 %v418
        %v487 = vunpack.c.l.b16 %v419
        %v488 = vunpack.c.h.b16 %v419
        %v489 = vunpack.c.l.b16 %v420
        %v490 = vunpack.c.l.b16 %v421
        %v491 = vunpack.c.h.b16 %v421
        %v492 = vunpack.c.l.b16 %v422
        %v493 = vunpack.c.l.b16 %v423
        %v494 = vunpack.c.h.b16 %v423
        %v495 = vunpack.c.l.b16 %v424
        %v496 = vunpack.c.l.b16 %v425
        %v497 = vunpack.c.h.b16 %v425
        %v498 = vunpack.c.l.b16 %v426
        %v499 = vunpack.c.l.b16 %v427
        %v500 = vunpack.c.h.b16 %v427
        %v501 = vunpack.c.l.b16 %v428
        %v502 = vunpack.c.l.b16 %v429
        %v503 = vunpack.c.h.b16 %v429
        %v504 = vunpack.c.l.b16 %v430
        %v505 = vunpack.c.l.b16 %v431
        %v506 = vunpack.c.h.b16 %v431
        %v507 = vunpack.c.l.b16 %v432
        %v508 = vunpack.c.l.b16 %v433
        %v509 = vunpack.c.h.b16 %v433
        %v510 = vunpack.c.l.b16 %v434
        %v511 = vunpack.c.l.b16 %v435
        %v512 = vunpack.c.h.b16 %v435
        %v513 = vunpack.c.l.b16 %v436
        %v514 = vunpack.c.l.b16 %v437
        %v515 = vunpack.c.h.b16 %v437
        %v516 = vunpack.c.l.b16 %v438
        %v517 = vunpack.c.l.b16 %v439
        %v518 = vunpack.c.h.b16 %v439
        %v519 = vunpack.c.l.b16 %v440
        %v520 = vunpack.c.l.b16 %v441
        %v521 = vunpack.c.h.b16 %v441
        %v522 = vunpack.c.l.b16 %v442
        %v523 = vunpack.c.l.b16 %v443
        %v524 = vunpack.c.h.b16 %v443
        %v525 = vunpack.c.l.b16 %v444
        %v526 = vunpack.c.l.b16 %v445
        %v527 = vunpack.c.h.b16 %v445
        %v528 = vunpack.c.l.b16 %v446
        %v529 = vunpack.c.l.b16 %v447
        %v530 = vunpack.c.h.b16 %v447
        %v531 = vunpack.c.l.b16 %v448
        %v532 = vpack.c.b16 %v487, %v484
        %v533 = vpack.c.b16 %v488, %v485
        %v534 = vpack.c.b16 %v489, %v486
        %v535 = vpack.c.b16 %v493, %v490
        %v536 = vpack.c.b16 %v494, %v491
        %v537 = vpack.c.b16 %v495, %v492
        %v538 = vpack.c.b16 %v499, %v496
        %v539 = vpack.c.b16 %v500, %v497
        %v540 = vpack.c.b16 %v501, %v498
        %v541 = vpack.c.b16 %v505, %v502
        %v542 = vpack.c.b16 %v506, %v503
        %v543 = vpack.c.b16 %v507, %v504
        %v544 = vpack.c.b16 %v511, %v508
        %v545 = vpack.c.b16 %v512, %v509
        %v546 = vpack.c.b16 %v513, %v510
        %v547 = vpack.c.b16 %v517, %v514
        %v548 = vpack.c.b16 %v518, %v515
        %v549 = vpack.c.b16 %v519, %v516
        %v550 = vpack.c.b16 %v523, %v520
        %v551 = vpack.c.b16 %v524, %v521
        %v552 = vpack.c.b16 %v525, %v522
        %v553 = vpack.c.b16 %v529, %v526
        %v554 = vpack.c.b16 %v530, %v527
        %v555 = vpack.c.b16 %v531, %v528
        %580 = vmatpush.bf16.msra.mxu0 %v553
        %581 = vmatpush.bf16.msra.mxu0 %v550
        %582 = vmatpush.bf16.msra.mxu0 %v547
        %583 = vmatpush.bf16.msra.mxu0 %v544
        %584 = vmatpush.bf16.msra.mxu0 %v541
        %585 = vmatpush.bf16.msra.mxu0 %v538
        %586 = vmatpush.bf16.msra.mxu0 %v535
        %587 = vmatpush.bf16.msra.mxu0 %v532
        %588 = vmatmul.bf16.gmra.mxu0 %v416
        %v589 = vpop.f32.mrf.mxu0
        %v590 = vadd.f32 %v449, %v589
        %v591 = vpop.f32.mrf.mxu0
        %592 = vdwg.mxu0
        %593 = vmatpush.bf16.msra.mxu0 %v554
        %594 = vmatpush.bf16.msra.mxu0 %v551
        %595 = vmatpush.bf16.msra.mxu0 %v548
        %596 = vmatpush.bf16.msra.mxu0 %v545
        %597 = vmatpush.bf16.msra.mxu0 %v542
        %598 = vmatpush.bf16.msra.mxu0 %v539
        %599 = vmatpush.bf16.msra.mxu0 %v536
        %600 = vmatpush.bf16.msra.mxu0 %v533
        %601 = vmatmul.bf16.gmra.mxu0 %v416
        %v602 = vpop.f32.mrf.mxu0
        %v603 = vadd.f32 %v450, %v602
        %v604 = vpop.f32.mrf.mxu0
        %605 = vdwg.mxu0
        %606 = vmatpush.bf16.msra.mxu0 %v555
        %607 = vmatpush.bf16.msra.mxu0 %v552
        %608 = vmatpush.bf16.msra.mxu0 %v549
        %609 = vmatpush.bf16.msra.mxu0 %v546
        %610 = vmatpush.bf16.msra.mxu0 %v543
        %611 = vmatpush.bf16.msra.mxu0 %v540
        %612 = vmatpush.bf16.msra.mxu0 %v537
        %613 = vmatpush.bf16.msra.mxu0 %v534
        %614 = vmatmul.bf16.gmra.mxu0 %v416
        %v615 = vpop.f32.mrf.mxu0
        %v616 = vadd.f32 %v451, %v615
        %v617 = vpop.f32.mrf.mxu0
        %618 = vdwg.mxu0
        %v619 = vmul.f32 %v590, %v405
        %v620 = vmul.f32 %v590, %v406
        %v621 = vmul.f32 %v590, %v407
        %v622 = vmul.f32 %v590, %v408
        %623 = vmatpush.xpose.msra.mxu0 0.0
        %624 = vmatpush.xpose.msra.mxu0 0.0
        %625 = vmatpush.xpose.msra.mxu0 0.0
        %626 = vmatpush.xpose.msra.mxu0 0.0
        %627 = vmatpush.xpose.msra.mxu0 0.0
        %628 = vmatpush.xpose.msra.mxu0 0.0
        %629 = vmatpush.xpose.msra.mxu0 0.0
        %630 = vmatpush.xpose.msra.mxu0 0.0
        %631 = vmatpush.xpose.msra.mxu0 0.0
        %632 = vmatpush.xpose.msra.mxu0 0.0
        %633 = vmatpush.xpose.msra.mxu0 0.0
        %634 = vmatpush.xpose.msra.mxu0 0.0
        %635 = vmatpush.xpose.msra.mxu0 0.0
        %636 = vmatpush.xpose.msra.mxu0 0.0
        %637 = vmatpush.xpose.msra.mxu0 0.0
        %638 = vmatpush.xpose.msra.mxu0 %v603
        %639 = vmatmul.f32.gmra.mxu0 %v619
        %v640 = vpop.f32.mrf.mxu0
        %v641 = vadd.f32 0.0, %v640
        %642 = vmatmul.f32.gmra.mxu0 %v620
        %v643 = vpop.f32.mrf.mxu0
        %v644 = vadd.f32 0.0, %v643
        %645 = vmatmul.f32.gmra.mxu0 %v621
        %v646 = vpop.f32.mrf.mxu0
        %v647 = vadd.f32 0.0, %v646
        %648 = vmatmul.f32.gmra.mxu0 %v622
        %v649 = vpop.f32.mrf.mxu0
        %v650 = vadd.f32 0.0, %v649
        %651 = vdwg.mxu0
        %v652 = vmul.f32 %v641, 0.17677669
        %v653 = vmul.f32 %v644, 0.17677669
        %v654 = vmul.f32 %v647, 0.17677669
        %v655 = vmul.f32 %v650, 0.17677669
        %v656 = vadd.f32 %v652, %v409
        %v657 = vadd.f32 %v653, %v410
        %v658 = vadd.f32 %v654, %v411
        %v659 = vadd.f32 %v655, %v412
        %vm660 = vcmask 64512
        %v661 = vsel %vm660, %v656, -inf
        %662 = vmax.xlane.f32.xlu0 %v661
        %v663 = vpop.xlane.xlu0 %662
        %v664 = vsel %vm660, %v657, -inf
        %665 = vmax.xlane.f32.xlu0 %v664
        %v666 = vpop.xlane.xlu0 %665
        %v667 = vsel %vm660, %v658, -inf
        %668 = vmax.xlane.f32.xlu0 %v667
        %v669 = vpop.xlane.xlu0 %668
        %v670 = vsel %vm660, %v659, -inf
        %671 = vmax.xlane.f32.xlu0 %v670
        %v672 = vpop.xlane.xlu0 %671
        %v673 = vsub.f32 %v656, %v663
        %v674 = vsub.f32 %v657, %v666
        %v675 = vsub.f32 %v658, %v669
        %v676 = vsub.f32 %v659, %v672
        %v677 = vmul.f32 %v673, 1.442695
        %v678 = vpow.pop %v677
        %v679 = vmul.f32 %v674, 1.442695
        %v680 = vpow.pop %v679
        %v681 = vmul.f32 %v675, 1.442695
        %v682 = vpow.pop %v681
        %v683 = vmul.f32 %v676, 1.442695
        %v684 = vpow.pop %v683
        %v685 = vsel %vm660, %v678, 0.0
        %686 = vadd.xlane.f32.xlu0 %v685
        %v687 = vpop.xlane.xlu0 %686
        %v688 = vsel %vm660, %v680, 0.0
        %689 = vadd.xlane.f32.xlu0 %v688
        %v690 = vpop.xlane.xlu0 %689
        %v691 = vsel %vm660, %v682, 0.0
        %692 = vadd.xlane.f32.xlu0 %v691
        %v693 = vpop.xlane.xlu0 %692
        %v694 = vsel %vm660, %v684, 0.0
        %695 = vadd.xlane.f32.xlu0 %v694
        %v696 = vpop.xlane.xlu0 %695
        %v697 = vrcp.pop %v687
        %v698 = vmul.f32 %v687, %v697
        %v699 = vsub.f32 1.0, %v698
        %v700 = vmul.f32 %v697, %v699
        %v701 = vadd.f32 %v697, %v700
        %vm702 = vweird.f32 %v687
        %vm703 = vweird.f32 %v697
        %vm704 = vmor %vm702, %vm703
        %v705 = vsel %vm704, %v697, %v701
        %v706 = vand.u32 2147483647, %v687
        %vm707 = vcmp.eq.f32.partialorder %v706, 8.507059e+37
        %v708 = vand.u32 %v687, 2147483648
        %v709 = vor.u32 1.1754944e-38, %v708
        %v710 = vsel %vm707, %v709, %v705
        %v711 = vrcp.pop %v690
        %v712 = vmul.f32 %v690, %v711
        %v713 = vsub.f32 1.0, %v712
        %v714 = vmul.f32 %v711, %v713
        %v715 = vadd.f32 %v711, %v714
        %vm716 = vweird.f32 %v690
        %vm717 = vweird.f32 %v711
        %vm718 = vmor %vm716, %vm717
        %v719 = vsel %vm718, %v711, %v715
        %v720 = vand.u32 2147483647, %v690
        %vm721 = vcmp.eq.f32.partialorder %v720, 8.507059e+37
        %v722 = vand.u32 %v690, 2147483648
        %v723 = vor.u32 1.1754944e-38, %v722
        %v724 = vsel %vm721, %v723, %v719
        %v725 = vrcp.pop %v693
        %v726 = vmul.f32 %v693, %v725
        %v727 = vsub.f32 1.0, %v726
        %v728 = vmul.f32 %v725, %v727
        %v729 = vadd.f32 %v725, %v728
        %vm730 = vweird.f32 %v693
        %vm731 = vweird.f32 %v725
        %vm732 = vmor %vm730, %vm731
        %v733 = vsel %vm732, %v725, %v729
        %v734 = vand.u32 2147483647, %v693
        %vm735 = vcmp.eq.f32.partialorder %v734, 8.507059e+37
        %v736 = vand.u32 %v693, 2147483648
        %v737 = vor.u32 1.1754944e-38, %v736
        %v738 = vsel %vm735, %v737, %v733
        %v739 = vrcp.pop %v696
        %v740 = vmul.f32 %v696, %v739
        %v741 = vsub.f32 1.0, %v740
        %v742 = vmul.f32 %v739, %v741
        %v743 = vadd.f32 %v739, %v742
        %vm744 = vweird.f32 %v696
        %vm745 = vweird.f32 %v739
        %vm746 = vmor %vm744, %vm745
        %v747 = vsel %vm746, %v739, %v743
        %v748 = vand.u32 2147483647, %v696
        %vm749 = vcmp.eq.f32.partialorder %v748, 8.507059e+37
        %v750 = vand.u32 %v696, 2147483648
        %v751 = vor.u32 1.1754944e-38, %v750
        %v752 = vsel %vm749, %v751, %v747
        %v753 = vmul.f32 %v678, %v710
        %v754 = vmul.f32 %v680, %v724
        %v755 = vmul.f32 %v682, %v738
        %v756 = vmul.f32 %v684, %v752
        %v758 = vsel %vm660, %v753, 0
        %v761 = vsel %vm660, %v754, 0
        %v764 = vsel %vm660, %v755, 0
        %v767 = vsel %vm660, %v756, 0
        %769 = vmatpush.msra.mxu0 0.0
        %770 = vmatpush.msra.mxu0 0.0
        %771 = vmatpush.msra.mxu0 0.0
        %772 = vmatpush.msra.mxu0 0.0
        %773 = vmatpush.msra.mxu0 0.0
        %774 = vmatpush.msra.mxu0 0.0
        %775 = vmatpush.msra.mxu0 0.0
        %776 = vmatpush.msra.mxu0 0.0
        %777 = vmatpush.msra.mxu0 0.0
        %778 = vmatpush.msra.mxu0 0.0
        %779 = vmatpush.msra.mxu0 0.0
        %780 = vmatpush.msra.mxu0 0.0
        %781 = vmatpush.msra.mxu0 0.0
        %782 = vmatpush.msra.mxu0 0.0
        %783 = vmatpush.msra.mxu0 0.0
        %784 = vmatpush.msra.mxu0 %v616
        %785 = vmatmul.f32.gmra.mxu0 %v758
        %v786 = vpop.f32.mrf.mxu0
        %v787 = vadd.f32 0.0, %v786
        %788 = vmatmul.f32.gmra.mxu0 %v761
        %v789 = vpop.f32.mrf.mxu0
        %v790 = vadd.f32 0.0, %v789
        %791 = vmatmul.f32.gmra.mxu0 %v764
        %v792 = vpop.f32.mrf.mxu0
        %v793 = vadd.f32 0.0, %v792
        %794 = vmatmul.f32.gmra.mxu0 %v767
        %v795 = vpop.f32.mrf.mxu0
        %v796 = vadd.f32 0.0, %v795
        %797 = vdwg.mxu0
        %v798 = vmul.f32 %v787, %v405
        %v799 = vmul.f32 %v790, %v406
        %v800 = vmul.f32 %v793, %v407
        %v801 = vmul.f32 %v796, %v408
        %v802 = vadd.f32 %v798, %v799
        %v803 = vadd.f32 %v802, %v800
        %v804 = vadd.f32 %v803, %v801
        %v805 = vpack.c.bf16 %v804, %v804
        %v806 = vld [vmem:[#allocation7] sm:$0xf]
        %v807 = vld [vmem:[#allocation7 + $0x4] sm:$0xf]
        %v808 = vld [vmem:[#allocation7 + $0x8] sm:$0xf]
        %v809 = vld [vmem:[#allocation7 + $0xc] sm:$0xf]
        %v810 = vld [vmem:[#allocation7 + $0x10] sm:$0xf]
        %v811 = vld [vmem:[#allocation7 + $0x14] sm:$0xf]
        %v812 = vld [vmem:[#allocation7 + $0x18] sm:$0xf]
        %v813 = vld [vmem:[#allocation7 + $0x1c] sm:$0xf]
        %v814 = vld [vmem:[#allocation7 + $0x20] sm:$0xf]
        %v815 = vld [vmem:[#allocation7 + $0x24] sm:$0xf]
        %v816 = vld [vmem:[#allocation7 + $0x28] sm:$0xf]
        %v817 = vld [vmem:[#allocation7 + $0x2c] sm:$0xf]
        %v818 = vld [vmem:[#allocation7 + $0x30] sm:$0xf]
        %v819 = vld [vmem:[#allocation7 + $0x34] sm:$0xf]
        %v820 = vld [vmem:[#allocation7 + $0x38] sm:$0xf]
        %v821 = vld [vmem:[#allocation7 + $0x3c] sm:$0xf]
        %v822 = vperm.slane %v413, 1
        %v839 = vunpack.c.l.b16 %v806
        %v840 = vunpack.c.l.b16 %v807
        %v841 = vunpack.c.l.b16 %v808
        %v842 = vunpack.c.l.b16 %v809
        %v843 = vunpack.c.l.b16 %v810
        %v844 = vunpack.c.l.b16 %v811
        %v845 = vunpack.c.l.b16 %v812
        %v846 = vunpack.c.l.b16 %v813
        %v847 = vunpack.c.l.b16 %v814
        %v848 = vunpack.c.l.b16 %v815
        %v849 = vunpack.c.l.b16 %v816
        %v850 = vunpack.c.l.b16 %v817
        %v851 = vunpack.c.l.b16 %v818
        %v852 = vunpack.c.l.b16 %v819
        %v853 = vunpack.c.l.b16 %v820
        %v854 = vunpack.c.l.b16 %v821
        %v855 = vpack.c.b16 %v840, %v839
        %v856 = vpack.c.b16 %v842, %v841
        %v857 = vpack.c.b16 %v844, %v843
        %v858 = vpack.c.b16 %v846, %v845
        %v859 = vpack.c.b16 %v848, %v847
        %v860 = vpack.c.b16 %v850, %v849
        %v861 = vpack.c.b16 %v852, %v851
        %v862 = vpack.c.b16 %v854, %v853
        %871 = vmatpush.bf16.msra.mxu0 %v862
        %872 = vmatpush.bf16.msra.mxu0 %v861
        %873 = vmatpush.bf16.msra.mxu0 %v860
        %874 = vmatpush.bf16.msra.mxu0 %v859
        %875 = vmatpush.bf16.msra.mxu0 %v858
        %876 = vmatpush.bf16.msra.mxu0 %v857
        %877 = vmatpush.bf16.msra.mxu0 %v856
        %878 = vmatpush.bf16.msra.mxu0 %v855
        %879 = vmatmul.bf16.gmra.mxu0 %v805
        %v880 = vpop.f32.mrf.mxu0
        %v881 = vadd.f32 %v822, %v880
        %v882 = vpop.f32.mrf.mxu0
        %883 = vdwg.mxu0
        %v884 = vadd.f32 %v881, %v404
        %885 = vadd.xlane.f32.xlu0 %v884
        %v886 = vpop.xlane.xlu0 %885
        %v887 = vrcp.pop 128.0
        %v888 = vmul.f32 128.0, %v887
        %v889 = vsub.f32 1.0, %v888
        %v890 = vmul.f32 %v887, %v889
        %v891 = vadd.f32 %v887, %v890
        %vm892 = vweird.f32 %v887
        %v893 = vsel %vm892, %v887, %v891
        %v894 = vmul.f32 %v886, %v893
        %v895 = vsub.f32 %v884, %v894
        %v896 = vmul.f32 %v895, %v895
        %897 = vadd.xlane.f32.xlu0 %v896
        %v898 = vpop.xlane.xlu0 %897
        %v899 = vmul.f32 %v898, %v893
        %v900 = vadd.f32 %v899, 1e-05
        %v901 = vrsqrt.pop %v900
        %v902 = vmul.f32 %v901, %v900
        %v903 = vmul.f32 %v902, %v901
        %v904 = vmul.f32 0.5, %v903
        %v905 = vsub.f32 1.5, %v904
        %v906 = vmul.f32 %v901, %v905
        %vm907 = vweird.f32 %v900
        %vm908 = vweird.f32 %v901
        %vm909 = vmor %vm907, %vm908
        %v910 = vsel %vm909, %v901, %v906
        %v911 = vmul.f32 %v895, %v910
        %v912 = vperm.slane %v413, 2
        %v913 = vmul.f32 %v912, %v911
        %v914 = vperm.slane %v413, 3
        %v915 = vadd.f32 %v913, %v914
        %v916 = vpack.c.bf16 %v915, %v915
        %v917 = vld [vmem:[#allocation8] sm:$0xff]
        %v918 = vld [vmem:[#allocation8 + $0x8] sm:$0xff]
        %v919 = vld [vmem:[#allocation8 + $0x10] sm:$0xff]
        %v920 = vld [vmem:[#allocation8 + $0x18] sm:$0xff]
        %v921 = vld [vmem:[#allocation8 + $0x20] sm:$0xff]
        %v922 = vld [vmem:[#allocation8 + $0x28] sm:$0xff]
        %v923 = vld [vmem:[#allocation8 + $0x30] sm:$0xff]
        %v924 = vld [vmem:[#allocation8 + $0x38] sm:$0xff]
        %v925 = vld [vmem:[#allocation8 + $0x40] sm:$0xff]
        %v926 = vld [vmem:[#allocation8 + $0x48] sm:$0xff]
        %v927 = vld [vmem:[#allocation8 + $0x50] sm:$0xff]
        %v928 = vld [vmem:[#allocation8 + $0x58] sm:$0xff]
        %v929 = vld [vmem:[#allocation8 + $0x60] sm:$0xff]
        %v930 = vld [vmem:[#allocation8 + $0x68] sm:$0xff]
        %v931 = vld [vmem:[#allocation8 + $0x70] sm:$0xff]
        %v932 = vld [vmem:[#allocation8 + $0x78] sm:$0xff]
        %v933 = vperm.slane %v413, 4
        %v934 = vperm.slane %v414, 4
        %v951 = vunpack.c.l.b16 %v917
        %v952 = vunpack.c.h.b16 %v917
        %v953 = vunpack.c.l.b16 %v918
        %v954 = vunpack.c.h.b16 %v918
        %v955 = vunpack.c.l.b16 %v919
        %v956 = vunpack.c.h.b16 %v919
        %v957 = vunpack.c.l.b16 %v920
        %v958 = vunpack.c.h.b16 %v920
        %v959 = vunpack.c.l.b16 %v921
        %v960 = vunpack.c.h.b16 %v921
        %v961 = vunpack.c.l.b16 %v922
        %v962 = vunpack.c.h.b16 %v922
        %v963 = vunpack.c.l.b16 %v923
        %v964 = vunpack.c.h.b16 %v923
        %v965 = vunpack.c.l.b16 %v924
        %v966 = vunpack.c.h.b16 %v924
        %v967 = vunpack.c.l.b16 %v925
        %v968 = vunpack.c.h.b16 %v925
        %v969 = vunpack.c.l.b16 %v926
        %v970 = vunpack.c.h.b16 %v926
        %v971 = vunpack.c.l.b16 %v927
        %v972 = vunpack.c.h.b16 %v927
        %v973 = vunpack.c.l.b16 %v928
        %v974 = vunpack.c.h.b16 %v928
        %v975 = vunpack.c.l.b16 %v929
        %v976 = vunpack.c.h.b16 %v929
        %v977 = vunpack.c.l.b16 %v930
        %v978 = vunpack.c.h.b16 %v930
        %v979 = vunpack.c.l.b16 %v931
        %v980 = vunpack.c.h.b16 %v931
        %v981 = vunpack.c.l.b16 %v932
        %v982 = vunpack.c.h.b16 %v932
        %v983 = vpack.c.b16 %v953, %v951
        %v984 = vpack.c.b16 %v954, %v952
        %v985 = vpack.c.b16 %v957, %v955
        %v986 = vpack.c.b16 %v958, %v956
        %v987 = vpack.c.b16 %v961, %v959
        %v988 = vpack.c.b16 %v962, %v960
        %v989 = vpack.c.b16 %v965, %v963
        %v990 = vpack.c.b16 %v966, %v964
        %v991 = vpack.c.b16 %v969, %v967
        %v992 = vpack.c.b16 %v970, %v968
        %v993 = vpack.c.b16 %v973, %v971
        %v994 = vpack.c.b16 %v974, %v972
        %v995 = vpack.c.b16 %v977, %v975
        %v996 = vpack.c.b16 %v978, %v976
        %v997 = vpack.c.b16 %v981, %v979
        %v998 = vpack.c.b16 %v982, %v980
        %1015 = vmatpush.bf16.msra.mxu0 %v997
        %1016 = vmatpush.bf16.msra.mxu0 %v995
        %1017 = vmatpush.bf16.msra.mxu0 %v993
        %1018 = vmatpush.bf16.msra.mxu0 %v991
        %1019 = vmatpush.bf16.msra.mxu0 %v989
        %1020 = vmatpush.bf16.msra.mxu0 %v987
        %1021 = vmatpush.bf16.msra.mxu0 %v985
        %1022 = vmatpush.bf16.msra.mxu0 %v983
        %1023 = vmatmul.bf16.gmra.mxu0 %v916
        %v1024 = vpop.f32.mrf.mxu0
        %v1025 = vadd.f32 %v933, %v1024
        %v1026 = vpop.f32.mrf.mxu0
        %1027 = vdwg.mxu0
        %1028 = vmatpush.bf16.msra.mxu0 %v998
        %1029 = vmatpush.bf16.msra.mxu0 %v996
        %1030 = vmatpush.bf16.msra.mxu0 %v994
        %1031 = vmatpush.bf16.msra.mxu0 %v992
        %1032 = vmatpush.bf16.msra.mxu0 %v990
        %1033 = vmatpush.bf16.msra.mxu0 %v988
        %1034 = vmatpush.bf16.msra.mxu0 %v986
        %1035 = vmatpush.bf16.msra.mxu0 %v984
        %1036 = vmatmul.bf16.gmra.mxu0 %v916
        %v1037 = vpop.f32.mrf.mxu0
        %v1038 = vadd.f32 %v934, %v1037
        %v1039 = vpop.f32.mrf.mxu0
        %1040 = vdwg.mxu0
        %v1041 = vmax.f32 %v1025, 0.0
        %v1042 = vmax.f32 %v1038, 0.0
        %v1043 = vpack.c.bf16 %v1041, %v1041
        %v1044 = vpack.c.bf16 %v1042, %v1042
        %v1045 = vld [vmem:[#allocation10] sm:$0xf]
        %v1046 = vld [vmem:[#allocation10 + $0x4] sm:$0xf]
        %v1047 = vld [vmem:[#allocation10 + $0x8] sm:$0xf]
        %v1048 = vld [vmem:[#allocation10 + $0xc] sm:$0xf]
        %v1049 = vld [vmem:[#allocation10 + $0x10] sm:$0xf]
        %v1050 = vld [vmem:[#allocation10 + $0x14] sm:$0xf]
        %v1051 = vld [vmem:[#allocation10 + $0x18] sm:$0xf]
        %v1052 = vld [vmem:[#allocation10 + $0x1c] sm:$0xf]
        %v1053 = vld [vmem:[#allocation10 + $0x20] sm:$0xf]
        %v1054 = vld [vmem:[#allocation10 + $0x24] sm:$0xf]
        %v1055 = vld [vmem:[#allocation10 + $0x28] sm:$0xf]
        %v1056 = vld [vmem:[#allocation10 + $0x2c] sm:$0xf]
        %v1057 = vld [vmem:[#allocation10 + $0x30] sm:$0xf]
        %v1058 = vld [vmem:[#allocation10 + $0x34] sm:$0xf]
        %v1059 = vld [vmem:[#allocation10 + $0x38] sm:$0xf]
        %v1060 = vld [vmem:[#allocation10 + $0x3c] sm:$0xf]
        %v1061 = vld [vmem:[#allocation10 + $0x40] sm:$0xf]
        %v1062 = vld [vmem:[#allocation10 + $0x44] sm:$0xf]
        %v1063 = vld [vmem:[#allocation10 + $0x48] sm:$0xf]
        %v1064 = vld [vmem:[#allocation10 + $0x4c] sm:$0xf]
        %v1065 = vld [vmem:[#allocation10 + $0x50] sm:$0xf]
        %v1066 = vld [vmem:[#allocation10 + $0x54] sm:$0xf]
        %v1067 = vld [vmem:[#allocation10 + $0x58] sm:$0xf]
        %v1068 = vld [vmem:[#allocation10 + $0x5c] sm:$0xf]
        %v1069 = vld [vmem:[#allocation10 + $0x60] sm:$0xf]
        %v1070 = vld [vmem:[#allocation10 + $0x64] sm:$0xf]
        %v1071 = vld [vmem:[#allocation10 + $0x68] sm:$0xf]
        %v1072 = vld [vmem:[#allocation10 + $0x6c] sm:$0xf]
        %v1073 = vld [vmem:[#allocation10 + $0x70] sm:$0xf]
        %v1074 = vld [vmem:[#allocation10 + $0x74] sm:$0xf]
        %v1075 = vld [vmem:[#allocation10 + $0x78] sm:$0xf]
        %v1076 = vld [vmem:[#allocation10 + $0x7c] sm:$0xf]
        %v1077 = vperm.slane %v413, 5
        %v1110 = vunpack.c.l.b16 %v1045
        %v1111 = vunpack.c.l.b16 %v1046
        %v1112 = vunpack.c.l.b16 %v1047
        %v1113 = vunpack.c.l.b16 %v1048
        %v1114 = vunpack.c.l.b16 %v1049
        %v1115 = vunpack.c.l.b16 %v1050
        %v1116 = vunpack.c.l.b16 %v1051
        %v1117 = vunpack.c.l.b16 %v1052
        %v1118 = vunpack.c.l.b16 %v1053
        %v1119 = vunpack.c.l.b16 %v1054
        %v1120 = vunpack.c.l.b16 %v1055
        %v1121 = vunpack.c.l.b16 %v1056
        %v1122 = vunpack.c.l.b16 %v1057
        %v1123 = vunpack.c.l.b16 %v1058
        %v1124 = vunpack.c.l.b16 %v1059
        %v1125 = vunpack.c.l.b16 %v1060
        %v1126 = vunpack.c.l.b16 %v1061
        %v1127 = vunpack.c.l.b16 %v1062
        %v1128 = vunpack.c.l.b16 %v1063
        %v1129 = vunpack.c.l.b16 %v1064
        %v1130 = vunpack.c.l.b16 %v1065
        %v1131 = vunpack.c.l.b16 %v1066
        %v1132 = vunpack.c.l.b16 %v1067
        %v1133 = vunpack.c.l.b16 %v1068
        %v1134 = vunpack.c.l.b16 %v1069
        %v1135 = vunpack.c.l.b16 %v1070
        %v1136 = vunpack.c.l.b16 %v1071
        %v1137 = vunpack.c.l.b16 %v1072
        %v1138 = vunpack.c.l.b16 %v1073
        %v1139 = vunpack.c.l.b16 %v1074
        %v1140 = vunpack.c.l.b16 %v1075
        %v1141 = vunpack.c.l.b16 %v1076
        %v1142 = vpack.c.b16 %v1111, %v1110
        %v1143 = vpack.c.b16 %v1113, %v1112
        %v1144 = vpack.c.b16 %v1115, %v1114
        %v1145 = vpack.c.b16 %v1117, %v1116
        %v1146 = vpack.c.b16 %v1119, %v1118
        %v1147 = vpack.c.b16 %v1121, %v1120
        %v1148 = vpack.c.b16 %v1123, %v1122
        %v1149 = vpack.c.b16 %v1125, %v1124
        %v1150 = vpack.c.b16 %v1127, %v1126
        %v1151 = vpack.c.b16 %v1129, %v1128
        %v1152 = vpack.c.b16 %v1131, %v1130
        %v1153 = vpack.c.b16 %v1133, %v1132
        %v1154 = vpack.c.b16 %v1135, %v1134
        %v1155 = vpack.c.b16 %v1137, %v1136
        %v1156 = vpack.c.b16 %v1139, %v1138
        %v1157 = vpack.c.b16 %v1141, %v1140
        %1174 = vmatpush.bf16.msra.mxu0 %v1149
        %1175 = vmatpush.bf16.msra.mxu0 %v1148
        %1176 = vmatpush.bf16.msra.mxu0 %v1147
        %1177 = vmatpush.bf16.msra.mxu0 %v1146
        %1178 = vmatpush.bf16.msra.mxu0 %v1145
        %1179 = vmatpush.bf16.msra.mxu0 %v1144
        %1180 = vmatpush.bf16.msra.mxu0 %v1143
        %1181 = vmatpush.bf16.msra.mxu0 %v1142
        %1182 = vmatmul.bf16.gmra.mxu0 %v1043
        %v1183 = vpop.f32.mrf.mxu0
        %v1184 = vadd.f32 %v1077, %v1183
        %v1185 = vpop.f32.mrf.mxu0
        %1186 = vdwg.mxu0
        %1187 = vmatpush.bf16.msra.mxu0 %v1157
        %1188 = vmatpush.bf16.msra.mxu0 %v1156
        %1189 = vmatpush.bf16.msra.mxu0 %v1155
        %1190 = vmatpush.bf16.msra.mxu0 %v1154
        %1191 = vmatpush.bf16.msra.mxu0 %v1153
        %1192 = vmatpush.bf16.msra.mxu0 %v1152
        %1193 = vmatpush.bf16.msra.mxu0 %v1151
        %1194 = vmatpush.bf16.msra.mxu0 %v1150
        %1195 = vmatmul.bf16.gmra.mxu0 %v1044
        %v1196 = vpop.f32.mrf.mxu0
        %v1197 = vadd.f32 %v1184, %v1196
        %v1198 = vpop.f32.mrf.mxu0
        %1199 = vdwg.mxu0
        %v1200 = vadd.f32 %v1197, %v915
        %1201 = vadd.xlane.f32.xlu0 %v1200
        %v1202 = vpop.xlane.xlu0 %1201
        %v1203 = vmul.f32 %v1202, %v893
        %v1204 = vsub.f32 %v1200, %v1203
        %v1205 = vmul.f32 %v1204, %v1204
        %1206 = vadd.xlane.f32.xlu0 %v1205
        %v1207 = vpop.xlane.xlu0 %1206
        %v1208 = vmul.f32 %v1207, %v893
        %v1209 = vadd.f32 %v1208, 1e-05
        %v1210 = vrsqrt.pop %v1209
        %v1211 = vmul.f32 %v1210, %v1209
        %v1212 = vmul.f32 %v1211, %v1210
        %v1213 = vmul.f32 0.5, %v1212
        %v1214 = vsub.f32 1.5, %v1213
        %v1215 = vmul.f32 %v1210, %v1214
        %vm1216 = vweird.f32 %v1209
        %vm1217 = vweird.f32 %v1210
        %vm1218 = vmor %vm1216, %vm1217
        %v1219 = vsel %vm1218, %v1210, %v1215
        %v1220 = vmul.f32 %v1204, %v1219
        %v1221 = vperm.slane %v413, 6
        %v1222 = vmul.f32 %v1221, %v1220
        %v1223 = vperm.slane %v413, 7
        %v1224 = vadd.f32 %v1222, %v1223
        %1225 = vst [vmem:[%s403] sm:$0xff] %v1224
        %s1226 = sand.u32 %s209, 1
        %s1227 = scalar_lea.sflag [#allocation4], %s1226
        %s1228 = sand.u32 %s209, 1
        %s1229 = smul.addr %s1228, 8
        %s1230 = scalar_lea.vmem [#allocation13], %s1229
        // Predicated region
        $region77: #{tpu_custom_call.1} parent=51 // pred_check
          %p1231 = pneg %p219
        $region78: #{tpu_custom_call.1} parent=51 // pred_check_branch
          %1233 = sbr.rel (%p1231) target = $region80
        $region79: #{tpu_custom_call.1} parent=51 // pred_region
          %1235 = vsyncadd %s1227, 0
          %s1236 = smul.addr %s28, 8
          %s1237 = scalar_lea.hbm %s8, %s1236
          %s1239 = sshll.u32 %s1230, 4
          %s1240 = int_to_ptr.vmem [resolvable:$true] %s1239
          %s1241 = sshll.u32 %s1237, 4
          %s1242 = int_to_ptr.hbm [resolvable:$true] %s1241
          %1244 = dma.vmem_to_hbm [thread:$0]  %s1240, 128, %s1242, %s1227
        $region80: #{tpu_custom_call.1} parent=51 // pred_fallthru
          _
      $region52: #{tpu_custom_call.1} parent=5 // pred_fallthru
        _
      %p1245 = scmp.le.s32.totalorder 2, %s23
      // Predicated region
      $region81: #{tpu_custom_call.1} parent=5 // pred_check
        %p1246 = pneg %p1245
      $region82: #{tpu_custom_call.1} parent=5 // pred_check_branch
        %1248 = sbr.rel (%p1246) target = $region84
      $region83: #{tpu_custom_call.1} parent=5 // pred_region
        %s1249 = ssub.s32 %s23, 2
        // Predicated region
        $region85: #{tpu_custom_call.1} parent=83 // pred_check
          %p1250 = pneg %p225
        $region86: #{tpu_custom_call.1} parent=83 // pred_check_branch
          %1252 = sbr.rel (%p1250) target = $region88
        $region87: #{tpu_custom_call.1} parent=83 // pred_region
          %s1253 = sand.u32 %s210, 1
          %s1254 = scalar_lea.sflag [#allocation4], %s1253
          %s1255 = sand.u32 %s210, 1
          %s1256 = smul.addr %s1255, 8
          %s1257 = scalar_lea.vmem [#allocation13], %s1256
          %1259 = dma.done %s1254, 128
        $region88: #{tpu_custom_call.1} parent=83 // pred_fallthru
          _
      $region84: #{tpu_custom_call.1} parent=5 // pred_fallthru
        _
    $region6: #{tpu_custom_call.1} parent=1 // loop_footer
      %s27 = sadd.s32 1, %s23
    $region7: #{tpu_custom_call.1} parent=1 // loop_footer_branch
      %22 = sbr.rel target = $region3
    $region8: #{tpu_custom_call.1} parent=1 // loop_exit
      _
    %1260 = vsyncpa [#allocation3], 1
    %s1261 = scalar_lea.sflag [#allocation3], 1
    %1262 = vsyncpa %s1261, 1
    %1263 = vsyncpa [#allocation6], 1
    %1264 = vsyncpa [#allocation9], 1
    %1265 = vsyncpa [#allocation12], 1
    %1266 = vsyncpa [#allocation4], 1
    %s1267 = scalar_lea.sflag [#allocation4], 1
    %1268 = vsyncpa %s1267, 1

</llo_original>
